<compile_context>
chip_gen: v6e
topology: v6e:2x2x1
jax: 0.10.0
libtpu: 0.0.40
codegen_flags: <defaults>
</compile_context>

<pallas_src>
import jax
import jax.numpy as jnp
from jax.experimental import pallas as pl
from jax.experimental.pallas import tpu as pltpu

_LANE = 128
_SUBLANE = 8      # f32 sublane tile; bulk row-count granularity
_ROW_PACK = 32    # row multiple satisfying packed sublane tiling for any dtype


def _cdiv(a: int, b: int) -> int:
    return -(-a // b)


def _tensorcores_per_chip() -> int:
    """2 TensorCores/chip only on v7x; single TC on v5e/v6e.  Defensive."""
    try:
        kind = jax.devices()[0].device_kind.lower().replace(" ", "")
    except Exception:
        return 1
    return 2 if ("v7" in kind or "tpu7" in kind) else 1


def _vmem_capacity_bytes() -> int:
    try:
        cap = getattr(pltpu.get_tpu_info(), "vmem_capacity_bytes", None)
        if cap:
            return int(cap)
    except Exception:
        pass
    return 64 * 1024 * 1024  # conservative: v7x per-TC VMEM


def _make_loss_kernel(tm, rows, tiles_total, tiles_per_split, needs_mask):
    """Kernel closure.  tm is always a multiple of 8 (see wrapper)."""

    def kernel(pred_ref, actual_ref, gt_ref, out_ref, acc_ref):
        j = pl.program_id(1)

        @pl.when(j == 0)
        def _():
            acc_ref[...] = jnp.zeros_like(acc_ref)

        # Native-dtype blocks; cast to f32 on the VPU right after load.
        pred = pred_ref[...].astype(jnp.float32)
        actual = actual_ref[...].astype(jnp.float32)
        gt = gt_ref[...].astype(jnp.float32)

        diff = actual - pred
        fp = jnp.logical_and(pred >= 0.5, actual < 0.5)
        # Fused: squared error + false-positive-gated gt_error (pure VPU).
        contrib = diff * diff + jnp.where(fp, gt, jnp.float32(0.0))

        if needs_mask:
            c = pl.program_id(0)
            t_raw = c * tiles_per_split + j
            t_eff = jnp.minimum(t_raw, tiles_total - 1)  # matches index_map clamp
            rid = t_eff * tm + jax.lax.broadcasted_iota(jnp.int32, (tm, _LANE), 0)
            valid = jnp.logical_and(rid < rows, t_raw < tiles_total)
            # Select (not multiply): unspecified padding (even NaN) cannot leak.
            contrib = jnp.where(valid, contrib, jnp.float32(0.0))

        # Fold (tm,128) into the persistent (8,128) accumulator with a
        # leading-axis reduce: pure vreg adds, no XLU, no layout change.
        acc_ref[...] += contrib.reshape(tm // _SUBLANE, _SUBLANE, _LANE).sum(axis=0)

        @pl.when(j == pl.num_programs(1) - 1)
        def _():
            # Only the tiny sublane reduce in-kernel; lane-dense (1,128) output.
            out_ref[...] = jnp.sum(acc_ref[...], axis=0, keepdims=True)

    return kernel


def gt_aware_weighted_mse_loss2(pred, actual, gt_error, tolerance=None,
                                weight_fp=9.0, *,
                                target_block_bytes=None,
                                num_splits=None,
                                vmem_limit_bytes=None):
    """Pallas implementation of GTAwareWeightedMSELoss2.forward.

    pred / actual / gt_error: arrays of identical (arbitrary) shape, any
    floating dtype.  Returns a scalar float32 loss.  `tolerance` and
    `weight_fp` are unused, matching the PyTorch module's forward().
    """
    del tolerance, weight_fp  # unused in the reference forward pass
    assert pred.shape == actual.shape == gt_error.shape
    n_elems = int(pred.size)

    # Generation-aware defaults.
    vmem_cap = _vmem_capacity_bytes()
    big_vmem = vmem_cap >= 128 * 1024 * 1024          # v5e / v6e
    if vmem_limit_bytes is None:
        vmem_limit_bytes = (96 if big_vmem else 48) * 1024 * 1024
    if target_block_bytes is None:
        target_block_bytes = (4 if big_vmem else 2) * 1024 * 1024
    if num_splits is None:
        num_splits = _tensorcores_per_chip()

    pred_f = jnp.ravel(pred)
    actual_f = jnp.ravel(actual)
    gt_f = jnp.ravel(gt_error)

    # Bulk: largest multiple of 8*128 elements (free reshape, no padding).
    rows = (n_elems // (_SUBLANE * _LANE)) * _SUBLANE
    n_bulk = rows * _LANE

    total = jnp.float32(0.0)

    if rows > 0:
        itemsize = max(jnp.dtype(x.dtype).itemsize for x in (pred, actual, gt_error))
        tm = max(_ROW_PACK,
                 (target_block_bytes // (_LANE * itemsize)) // _ROW_PACK * _ROW_PACK)
        if tm >= rows:
            tm = rows                      # single full-extent tile (rows % 8 == 0)
        tiles_total = _cdiv(rows, tm)

        ns = num_splits if (num_splits > 1 and tiles_total >= num_splits) else 1
        tiles_per_split = _cdiv(tiles_total, ns)
        needs_mask = (rows % tm != 0) or (ns * tiles_per_split != tiles_total)

        if ns * tiles_per_split == tiles_total:
            in_idx = lambda c, j: (c * tiles_per_split + j, 0)
        else:
            last = tiles_total - 1
            # Clamp duplicate trailing iterations onto the last valid tile;
            # their contribution is zeroed in-kernel via `t_raw < tiles_total`.
            in_idx = lambda c, j: (jnp.minimum(c * tiles_per_split + j, last), 0)

        def _as_rows(x):
            if n_bulk != x.shape[0]:
                x = x[:n_bulk]
            return x.reshape(rows, _LANE)

        p2, a2, g2 = _as_rows(pred_f), _as_rows(actual_f), _as_rows(gt_f)

        in_specs = [pl.BlockSpec((tm, _LANE), in_idx) for _ in range(3)]
        out_spec = pl.BlockSpec((1, _LANE), lambda c, j: (c, 0))

        cost = pl.CostEstimate(
            flops=7 * n_bulk,
            transcendentals=0,
            bytes_accessed=int(p2.size * p2.dtype.itemsize
                               + a2.size * a2.dtype.itemsize
                               + g2.size * g2.dtype.itemsize
                               + 4 * ns * _LANE),
        )

        partials = pl.pallas_call(
            _make_loss_kernel(tm, rows, tiles_total, tiles_per_split, needs_mask),
            out_shape=jax.ShapeDtypeStruct((ns, _LANE), jnp.float32),
            grid_spec=pltpu.PrefetchScalarGridSpec(
                num_scalar_prefetch=0,
                grid=(ns, tiles_per_split),
                in_specs=in_specs,
                out_specs=out_spec,
                scratch_shapes=[pltpu.VMEM((_SUBLANE, _LANE), jnp.float32)],
            ),
            compiler_params=pltpu.CompilerParams(
                dimension_semantics=("parallel", "arbitrary"),
                vmem_limit_bytes=vmem_limit_bytes,
            ),
            cost_estimate=cost,
        )(p2, a2, g2)

        total = total + jnp.sum(partials)   # 128*ns-element finish in XLA

    if n_bulk < n_elems:
        # < 1024-element tail finished in plain JAX (negligible).
        tp = pred_f[n_bulk:].astype(jnp.float32)
        ta = actual_f[n_bulk:].astype(jnp.float32)
        tg = gt_f[n_bulk:].astype(jnp.float32)
        td = ta - tp
        tfp = jnp.logical_and(tp >= 0.5, ta < 0.5)
        total = total + jnp.sum(td * td) + jnp.sum(jnp.where(tfp, tg, jnp.float32(0.0)))

    return total / jnp.float32(n_elems)


def _reference_loss(pred, actual, gt_error):
    pred = pred.astype(jnp.float32)
    actual = actual.astype(jnp.float32)
    gt_error = gt_error.astype(jnp.float32)
    diff = actual - pred
    squared_loss = jnp.mean(diff ** 2)
    bool_fp = jnp.logical_and(pred >= 0.5, actual < 0.5)
    false_positives_loss = jnp.mean(bool_fp.astype(jnp.float32) * gt_error)
    return squared_loss + false_positives_loss


if __name__ == "__main__":
    key = jax.random.PRNGKey(0)

    cases = [
        # Aligned small case (single full-extent tile, no masking).
        dict(shape=(2, 4, 16, 16), dtype=jnp.float32, kwargs={}, rtol=1e-5, atol=1e-6),
        # Tiny ragged case (exercises the plain-JAX tail path).
        dict(shape=(3, 7, 11), dtype=jnp.float32, kwargs={}, rtol=1e-5, atol=1e-6),
        # Ragged last tile + forced 2-way split (clamped index_map + row mask).
        dict(shape=(80, 128), dtype=jnp.float32,
             kwargs=dict(target_block_bytes=32 * _LANE * 4, num_splits=2),
             rtol=1e-5, atol=1e-6),
        # Native bf16 streaming, multi-tile accumulation.
        dict(shape=(4, 4, 32, 32), dtype=jnp.bfloat16,
             kwargs=dict(target_block_bytes=64 * _LANE * 2),
             rtol=1e-4, atol=1e-5),
    ]

    ok = True
    for case in cases:
        shape, dtype = case["shape"], case["dtype"]
        key, k1, k2, k3, k4 = jax.random.split(key, 5)
        pred = jax.random.uniform(k1, shape, dtype=jnp.float32).astype(dtype)
        actual = jax.random.uniform(k2, shape, dtype=jnp.float32).astype(dtype)
        gt_error = (jax.random.uniform(k3, shape, dtype=jnp.float32) * 5.0).astype(dtype)
        tolerance = jax.random.uniform(k4, shape, dtype=jnp.float32)  # unused

        loss = gt_aware_weighted_mse_loss2(pred, actual, gt_error, tolerance,
                                           **case["kwargs"])
        loss = jax.block_until_ready(loss)
        ref = _reference_loss(pred, actual, gt_error)
        if not jnp.allclose(loss, ref, rtol=case["rtol"], atol=case["atol"]):
            ok = False
            print("MISMATCH", shape, str(dtype), float(loss), float(ref))

    if ok:
        print("KERNEL_OK")
</pallas_src>

<mosaic_0001>
module attributes {stable_mosaic.version = 11 : i64} {
  func.func @kernel(%arg0: i32, %arg1: i32, %arg2: memref<16x128xf32, #tpu.memory_space<vmem>>, %arg3: memref<16x128xf32, #tpu.memory_space<vmem>>, %arg4: memref<16x128xf32, #tpu.memory_space<vmem>>, %arg5: memref<1x128xf32, #tpu.memory_space<vmem>>, %arg6: memref<8x128xf32, #tpu.memory_space<vmem>>) attributes {dimension_semantics = [#tpu.dimension_semantics<parallel>, #tpu.dimension_semantics<arbitrary>], iteration_bounds = array<i64: 1, 1>, scalar_prefetch = 0 : i64, scratch_operands = 1 : i64, tpu.core_type = #tpu.core_type<tc>, window_params = [{transform_indices = @transform_0, window_bounds = array<i64: 16, 128>}, {transform_indices = @transform_1, window_bounds = array<i64: 16, 128>}, {transform_indices = @transform_2, window_bounds = array<i64: 16, 128>}, {transform_indices = @transform_3, window_bounds = array<i64: 1, 128>}]} {
    %c0_i32 = arith.constant 0 : i32
    %0 = arith.cmpi eq, %arg1, %c0_i32 : i32
    %1 = arith.extui %0 : i1 to i32
    %c0_i32_0 = arith.constant 0 : i32
    %2 = arith.cmpi ne, %1, %c0_i32_0 : i32
    scf.if %2 {
      %cst_15 = arith.constant 0.000000e+00 : f32
      %24 = vector.broadcast %cst_15 : f32 to vector<8x128xf32>
      %c0_16 = arith.constant 0 : index
      %c0_17 = arith.constant 0 : index
      %25 = vector.load %arg6[%c0_16, %c0_17] : memref<8x128xf32, #tpu.memory_space<vmem>>, vector<8x128xf32>
      tpu.vector_store %arg6[%c0_16, %c0_17], %24 {strides = array<i32>} : memref<8x128xf32, #tpu.memory_space<vmem>>, vector<8x128xf32>,
    } else {
    }
    %c0 = arith.constant 0 : index
    %c0_1 = arith.constant 0 : index
    %3 = vector.load %arg2[%c0, %c0_1] : memref<16x128xf32, #tpu.memory_space<vmem>>, vector<16x128xf32>
    %c0_2 = arith.constant 0 : index
    %c0_3 = arith.constant 0 : index
    %4 = vector.load %arg3[%c0_2, %c0_3] : memref<16x128xf32, #tpu.memory_space<vmem>>, vector<16x128xf32>
    %c0_4 = arith.constant 0 : index
    %c0_5 = arith.constant 0 : index
    %5 = vector.load %arg4[%c0_4, %c0_5] : memref<16x128xf32, #tpu.memory_space<vmem>>, vector<16x128xf32>
    %6 = arith.subf %4, %3 : vector<16x128xf32>
    %cst = arith.constant 5.000000e-01 : f32
    %7 = vector.broadcast %cst : f32 to vector<16x128xf32>
    %8 = arith.cmpf oge, %3, %7 : vector<16x128xf32>
    %cst_6 = arith.constant 5.000000e-01 : f32
    %9 = vector.broadcast %cst_6 : f32 to vector<16x128xf32>
    %10 = arith.cmpf olt, %4, %9 : vector<16x128xf32>
    %11 = arith.andi %8, %10 : vector<16x128xi1>
    %12 = arith.mulf %6, %6 : vector<16x128xf32>
    %cst_7 = arith.constant 0.000000e+00 : f32
    %13 = vector.broadcast %cst_7 : f32 to vector<16x128xf32>
    %14 = arith.select %11, %5, %13 : vector<16x128xi1>, vector<16x128xf32>
    %15 = arith.addf %12, %14 : vector<16x128xf32>
    %c0_8 = arith.constant 0 : index
    %c0_9 = arith.constant 0 : index
    %16 = vector.load %arg6[%c0_8, %c0_9] : memref<8x128xf32, #tpu.memory_space<vmem>>, vector<8x128xf32>
    %17 = vector.shape_cast %15 : vector<16x128xf32> to vector<2x8x128xf32>
    %cst_10 = arith.constant dense<0.000000e+00> : vector<8x128xf32>
    %18 = vector.multi_reduction <add>, %17, %cst_10 [0] : vector<2x8x128xf32> to vector<8x128xf32>
    %19 = arith.addf %16, %18 : vector<8x128xf32>
    %c0_11 = arith.constant 0 : index
    %c0_12 = arith.constant 0 : index
    %20 = vector.load %arg6[%c0_11, %c0_12] : memref<8x128xf32, #tpu.memory_space<vmem>>, vector<8x128xf32>
    tpu.vector_store %arg6[%c0_11, %c0_12], %19 {strides = array<i32>} : memref<8x128xf32, #tpu.memory_space<vmem>>, vector<8x128xf32>,
    %c0_i32_13 = arith.constant 0 : i32
    %21 = arith.cmpi eq, %arg1, %c0_i32_13 : i32
    %22 = arith.extui %21 : i1 to i32
    %c0_i32_14 = arith.constant 0 : i32
    %23 = arith.cmpi ne, %22, %c0_i32_14 : i32
    scf.if %23 {
      %c0_15 = arith.constant 0 : index
      %c0_16 = arith.constant 0 : index
      %24 = vector.load %arg6[%c0_15, %c0_16] : memref<8x128xf32, #tpu.memory_space<vmem>>, vector<8x128xf32>
      %cst_17 = arith.constant dense<0.000000e+00> : vector<128xf32>
      %25 = vector.multi_reduction <add>, %24, %cst_17 [0] : vector<8x128xf32> to vector<128xf32>
      %26 = vector.shape_cast %25 : vector<128xf32> to vector<1x128xf32>
      %c0_18 = arith.constant 0 : index
      %c0_19 = arith.constant 0 : index
      %27 = vector.load %arg5[%c0_18, %c0_19] : memref<1x128xf32, #tpu.memory_space<vmem>>, vector<1x128xf32>
      tpu.vector_store %arg5[%c0_18, %c0_19], %26 {strides = array<i32>} : memref<1x128xf32, #tpu.memory_space<vmem>>, vector<1x128xf32>,
    } else {
    }
    return
  }
  func.func @transform_0(%arg0: i32, %arg1: i32) -> (i32, i32) {
    %c1_i32 = arith.constant 1 : i32
    %0 = arith.muli %arg0, %c1_i32 : i32
    %1 = arith.addi %0, %arg1 : i32
    %c0_i32 = arith.constant 0 : i32
    %c0_i32_0 = arith.constant 0 : i32
    return %1, %c0_i32 : i32, i32
  }
  func.func @transform_1(%arg0: i32, %arg1: i32) -> (i32, i32) {
    %c1_i32 = arith.constant 1 : i32
    %0 = arith.muli %arg0, %c1_i32 : i32
    %1 = arith.addi %0, %arg1 : i32
    %c0_i32 = arith.constant 0 : i32
    %c0_i32_0 = arith.constant 0 : i32
    return %1, %c0_i32 : i32, i32
  }
  func.func @transform_2(%arg0: i32, %arg1: i32) -> (i32, i32) {
    %c1_i32 = arith.constant 1 : i32
    %0 = arith.muli %arg0, %c1_i32 : i32
    %1 = arith.addi %0, %arg1 : i32
    %c0_i32 = arith.constant 0 : i32
    %c0_i32_0 = arith.constant 0 : i32
    return %1, %c0_i32 : i32, i32
  }
  func.func @transform_3(%arg0: i32, %arg1: i32) -> (i32, i32) {
    %c0_i32 = arith.constant 0 : i32
    %c0_i32_0 = arith.constant 0 : i32
    return %arg0, %c0_i32 : i32, i32
  }
}

</mosaic_0001>

<llo_original>
// kernel: tpu_custom_call.1
$region0: #{tpu_custom_call.1}
  #allocation0 [shape = 'u32[]', space=smem, size = 0x4, offset = 0x4, fixed_abs, tag = 'smem constant byte address 0x4 - core index']
  #allocation1 [shape = 'u32[144,128]{1,0:T(1,128)}', space=vmem, size = 0x12000, scoped, tag = 'internal scratch']
  #allocation2 [shape = 'f32[8,128]{1,0:T(8,128)}', space=vmem, size = 0x1000, scoped, tag = 'scratch operand']
  %s0 = inlined_call_operand.hbm [shape: f32[16,128], index: 0, kind: input, shape index: {}]
  %s1 = inlined_call_operand.hbm [shape: f32[16,128], index: 1, kind: input, shape index: {}]
  %s2 = inlined_call_operand.hbm [shape: f32[16,128], index: 2, kind: input, shape index: {}]
  %s3 = inlined_call_operand.hbm [shape: f32[1,128], index: 3, kind: output, shape index: {}]
  %s4 = sld [smem:[#allocation0]]
  $region42: #{tpu_custom_call.1} parent=0
    _
  %s6 = ssub.s32 1, %s4
  %s7 = scalar_select 0, %s6, %s4
  $region1: #{tpu_custom_call.1} parent=0
    #allocation3 [shape = 'u8[8192]{0}', space=vmem, size = 0x2000, scoped, tag = 'input window, operand 0, single buffered']
    #allocation4 [shape = 's32[1]{0}', space=sflag, size = 0x4, scoped, tag = 'scoped memory for tpu_custom_call.1']
    #allocation5 [shape = 's32[1]{0}', space=sflag, size = 0x4, scoped, tag = 'scoped memory for tpu_custom_call.1']
    #allocation6 [shape = 'u8[8192]{0}', space=vmem, size = 0x2000, scoped, tag = 'input window, operand 1, single buffered']
    #allocation7 [shape = 's32[1]{0}', space=sflag, size = 0x4, scoped, tag = 'scoped memory for tpu_custom_call.1']
    #allocation8 [shape = 'u8[8192]{0}', space=vmem, size = 0x2000, scoped, tag = 'input window, operand 2, single buffered']
    #allocation9 [shape = 'u8[512]{0}', space=vmem, size = 0x400, scoped, tag = 'output window, operand 0, single buffered']
    %8 = vsyncpa [#allocation4], 0
    %9 = vsyncpa [#allocation7], 0
    %10 = vsyncpa [#allocation5], 0
    // Predicated region
    $region2: #{tpu_custom_call.1} parent=1 // pred_check
      _
    $region3: #{tpu_custom_call.1} parent=1 // pred_check_branch
      %12 = sbr.rel (0) target = $region5
    $region4: #{tpu_custom_call.1} parent=1 // pred_region
      %s13 = sadd.s32 0, 0
      %s14 = smul.u32 2, %s13
      %s16 = ssub.s32 256, 256
      %17 = vsyncadd [#allocation4], %s16
      %s18 = smul.addr %s14, 128
      %s19 = scalar_lea.hbm %s0, %s18
      %s20 = sshll.u32 [#allocation3], 4
      %s21 = int_to_ptr.vmem [resolvable:$true] %s20
      %26 = dma.hbm_to_vmem [thread:$0]  %s19, 256, %s21, [#allocation4], 128, 128, 8
    $region5: #{tpu_custom_call.1} parent=1 // pred_fallthru
      _
    // Predicated region
    $region6: #{tpu_custom_call.1} parent=1 // pred_check
      _
    $region7: #{tpu_custom_call.1} parent=1 // pred_check_branch
      %28 = sbr.rel (0) target = $region9
    $region8: #{tpu_custom_call.1} parent=1 // pred_region
      %s29 = sadd.s32 0, 0
      %s30 = smul.u32 2, %s29
      %s32 = ssub.s32 256, 256
      %33 = vsyncadd [#allocation7], %s32
      %s34 = smul.addr %s30, 128
      %s35 = scalar_lea.hbm %s1, %s34
      %s36 = sshll.u32 [#allocation6], 4
      %s37 = int_to_ptr.vmem [resolvable:$true] %s36
      %42 = dma.hbm_to_vmem [thread:$0]  %s35, 256, %s37, [#allocation7], 128, 128, 8
    $region9: #{tpu_custom_call.1} parent=1 // pred_fallthru
      _
    // Predicated region
    $region10: #{tpu_custom_call.1} parent=1 // pred_check
      _
    $region11: #{tpu_custom_call.1} parent=1 // pred_check_branch
      %44 = sbr.rel (0) target = $region13
    $region12: #{tpu_custom_call.1} parent=1 // pred_region
      %s45 = sadd.s32 0, 0
      %s46 = smul.u32 2, %s45
      %s48 = ssub.s32 256, 256
      %49 = vsyncadd [#allocation7], %s48
      %s50 = smul.addr %s46, 128
      %s51 = scalar_lea.hbm %s2, %s50
      %s52 = sshll.u32 [#allocation8], 4
      %s53 = int_to_ptr.vmem [resolvable:$true] %s52
      %58 = dma.hbm_to_vmem [thread:$0]  %s51, 256, %s53, [#allocation7], 128, 128, 8
    $region13: #{tpu_custom_call.1} parent=1 // pred_fallthru
      _
    // Predicated region
    $region14: #{tpu_custom_call.1} parent=1 // pred_check
      _
    $region15: #{tpu_custom_call.1} parent=1 // pred_check_branch
      %60 = sbr.rel (0) target = $region17
    $region16: #{tpu_custom_call.1} parent=1 // pred_region
      %61 = dma.done [#allocation4], 256
    $region17: #{tpu_custom_call.1} parent=1 // pred_fallthru
      _
    // Predicated region
    $region18: #{tpu_custom_call.1} parent=1 // pred_check
      _
    $region19: #{tpu_custom_call.1} parent=1 // pred_check_branch
      %63 = sbr.rel (0) target = $region21
    $region20: #{tpu_custom_call.1} parent=1 // pred_region
      %64 = dma.done [#allocation7], 256
    $region21: #{tpu_custom_call.1} parent=1 // pred_fallthru
      _
    // Predicated region
    $region22: #{tpu_custom_call.1} parent=1 // pred_check
      _
    $region23: #{tpu_custom_call.1} parent=1 // pred_check_branch
      %66 = sbr.rel (0) target = $region25
    $region24: #{tpu_custom_call.1} parent=1 // pred_region
      %67 = dma.done [#allocation7], 256
    $region25: #{tpu_custom_call.1} parent=1 // pred_fallthru
      _
    %s68 = sadd.s32 0, 0
    %s69 = smul.u32 2, %s68
    %s70 = sadd.s32 0, 0
    %s71 = smul.u32 2, %s70
    %s72 = sadd.s32 0, 0
    %s73 = smul.u32 2, %s72
    %p74 = scmp.eq.s32.totalorder 0, 0
    // Predicated region
    $region26: #{tpu_custom_call.1} parent=1 // pred_check
      %p75 = pneg %p74
    $region27: #{tpu_custom_call.1} parent=1 // pred_check_branch
      %77 = sbr.rel (%p75) target = $region29
    $region28: #{tpu_custom_call.1} parent=1 // pred_region
      %78 = vst [vmem:[#allocation2] sm:$0xff] 0.0
    $region29: #{tpu_custom_call.1} parent=1 // pred_fallthru
      _
    %v79 = vld [vmem:[#allocation3] sm:$0xff]
    %v80 = vld [vmem:[#allocation3 + $0x8] sm:$0xff]
    %v81 = vld [vmem:[#allocation6] sm:$0xff]
    %v82 = vld [vmem:[#allocation6 + $0x8] sm:$0xff]
    %v83 = vld [vmem:[#allocation8] sm:$0xff]
    %v84 = vld [vmem:[#allocation8 + $0x8] sm:$0xff]
    %v85 = vsub.f32 %v81, %v79
    %v86 = vsub.f32 %v82, %v80
    %vm87 = vcmp.ge.f32.partialorder %v79, 0.5
    %vm88 = vcmp.ge.f32.partialorder %v80, 0.5
    %vm89 = vcmp.lt.f32.partialorder %v81, 0.5
    %vm90 = vcmp.lt.f32.partialorder %v82, 0.5
    %vm91 = vmand %vm87, %vm89
    %vm92 = vmand %vm88, %vm90
    %v93 = vmul.f32 %v85, %v85
    %v94 = vmul.f32 %v86, %v86
    %v95 = vsel %vm91, %v83, 0.0
    %v96 = vsel %vm92, %v84, 0.0
    %v97 = vadd.f32 %v93, %v95
    %v98 = vadd.f32 %v94, %v96
    %v99 = vld [vmem:[#allocation2] sm:$0xff]
    %v100 = vadd.f32 %v97, %v98
    %v101 = vadd.f32 %v99, %v100
    %102 = vst [vmem:[#allocation2] sm:$0xff] %v101
    // Predicated region
    $region30: #{tpu_custom_call.1} parent=1 // pred_check
      %p103 = pneg %p74
    $region31: #{tpu_custom_call.1} parent=1 // pred_check_branch
      %105 = sbr.rel (%p103) target = $region33
    $region32: #{tpu_custom_call.1} parent=1 // pred_region
      %v106 = vld [vmem:[#allocation2] sm:$0xff]
      %v107 = vrot.slane %v106, 4
      %v108 = vadd.f32 %v106, %v107
      %v109 = vrot.slane %v108, 2
      %v110 = vadd.f32 %v108, %v109
      %v111 = vrot.slane %v110, 1
      %v112 = vadd.f32 %v110, %v111
      %113 = vst [vmem:[#allocation9] sm:$0x1] %v112
    $region33: #{tpu_custom_call.1} parent=1 // pred_fallthru
      _
    // Predicated region
    $region34: #{tpu_custom_call.1} parent=1 // pred_check
      _
    $region35: #{tpu_custom_call.1} parent=1 // pred_check_branch
      %115 = sbr.rel (0) target = $region37
    $region36: #{tpu_custom_call.1} parent=1 // pred_region
      %s117 = ssub.s32 16, 16
      %118 = vsyncadd [#allocation5], %s117
      %s120 = sshll.u32 [#allocation9], 4
      %s121 = int_to_ptr.vmem [resolvable:$true] %s120
      %123 = dma.vmem_to_hbm [thread:$0]  %s121, 16, %s3, [#allocation5]
    $region37: #{tpu_custom_call.1} parent=1 // pred_fallthru
      _
    // Predicated region
    $region38: #{tpu_custom_call.1} parent=1 // pred_check
      _
    $region39: #{tpu_custom_call.1} parent=1 // pred_check_branch
      %125 = sbr.rel (0) target = $region41
    $region40: #{tpu_custom_call.1} parent=1 // pred_region
      %126 = dma.done [#allocation5], 16
    $region41: #{tpu_custom_call.1} parent=1 // pred_fallthru
      _
    %127 = vsyncpa [#allocation4], 1
    %128 = vsyncpa [#allocation7], 1
    %129 = vsyncpa [#allocation5], 1

</llo_original>
